<compile_context>
chip_gen: v5e
topology: v5e:2x2
jax: 0.10.0
libtpu: 0.0.40
codegen_flags: <defaults>
</compile_context>

<pallas_src>
import functools

import jax
import jax.numpy as jnp
from jax.experimental import pallas as pl
from jax.experimental.pallas import tpu as pltpu


def _round_up(x, m):
    return (x + m - 1) // m * m


def _pick_tile(dim_p, max_tile):
    """Largest multiple of 128 <= max_tile that divides dim_p (dim_p % 128 == 0)."""
    t = min(max_tile, dim_p)
    while dim_p % t != 0:
        t -= 128
    return t


_TUNE_CACHE = None


def _tune():
    """Per-generation tile / VMEM budget (v5e & v6e: 128 MiB VMEM; v7x: 64 MiB)."""
    global _TUNE_CACHE
    if _TUNE_CACHE is None:
        try:
            kind = jax.devices()[0].device_kind.lower()
        except Exception:
            kind = ""
        if ("v5" in kind) or ("v6" in kind):
            _TUNE_CACHE = dict(max_tm=512, max_tn=1024, max_tk=512,
                               vmem=96 * 1024 * 1024)
        else:  # v7x (64 MiB VMEM) or unknown -> conservative
            _TUNE_CACHE = dict(max_tm=256, max_tn=512, max_tk=512,
                               vmem=48 * 1024 * 1024)
    return _TUNE_CACHE


# ----------------------------------------------------------------------------
# Weight preparation (done ONCE at init): pad to lane-aligned shapes, cast bf16.
# ----------------------------------------------------------------------------

def prep_linear(w, b):
    K, N = w.shape
    Kp, Np = _round_up(K, 128), _round_up(N, 128)
    wp = jnp.pad(w.astype(jnp.float32), ((0, Kp - K), (0, Np - N))).astype(jnp.bfloat16)
    bp = jnp.pad(b.astype(jnp.float32).reshape(1, N), ((0, 0), (0, Np - N)))
    return {"w": wp, "b": bp, "k": K, "n": N}


def prep_ln(g, b):
    K = g.shape[0]
    Kp = _round_up(K, 128)
    gp = jnp.pad(g.astype(jnp.float32).reshape(1, K), ((0, 0), (0, Kp - K)))
    bp = jnp.pad(b.astype(jnp.float32).reshape(1, K), ((0, 0), (0, Kp - K)))
    return {"g": gp, "b": bp}


# ----------------------------------------------------------------------------
# Fused, tiled linear:  [LN(x)] @ W + b  -> [GELU] -> [a*out + b*residual]
# ----------------------------------------------------------------------------

def _make_linear_kernel(*, has_ln, has_res, activation, out_scale, res_scale,
                        n_k, true_k, pad_k, eps):
    multi_k = n_k > 1

    def kernel(*refs):
        it = iter(refs)
        x_ref = next(it)
        w_ref = next(it)
        b_ref = next(it)
        g_ref = next(it) if has_ln else None
        lb_ref = next(it) if has_ln else None
        r_ref = next(it) if has_res else None
        o_ref = next(it)
        acc_ref = next(it) if multi_k else None

        def lhs():
            x = x_ref[...]
            if has_ln:
                # LayerNorm prologue (full K row in one block).  Padded lanes
                # are zero; correct for them explicitly and divide by true K.
                x = x.astype(jnp.float32)
                mean = jnp.sum(x, axis=-1, keepdims=True) / true_k
                d = x - mean
                var = (jnp.sum(d * d, axis=-1, keepdims=True)
                       - (pad_k - true_k) * mean * mean) / true_k
                x = d * jax.lax.rsqrt(var + eps) * g_ref[...] + lb_ref[...]
            return x.astype(jnp.bfloat16)

        def epilogue(z):
            z = z + b_ref[...]
            if activation == "gelu":
                # exact (erf) GELU, matching torch.nn.GELU default
                z = 0.5 * z * (1.0 + jax.lax.erf(z * 0.7071067811865475))
            if has_res:
                z = out_scale * z + res_scale * r_ref[...].astype(jnp.float32)
            return z.astype(o_ref.dtype)

        if multi_k:
            k = pl.program_id(2)

            @pl.when(k == 0)
            def _():
                acc_ref[...] = jnp.zeros_like(acc_ref)

            acc_ref[...] += jnp.dot(lhs(), w_ref[...],
                                    preferred_element_type=jnp.float32)

            @pl.when(k == n_k - 1)
            def _():
                o_ref[...] = epilogue(acc_ref[...])
        else:
            o_ref[...] = epilogue(jnp.dot(lhs(), w_ref[...],
                                          preferred_element_type=jnp.float32))

    return kernel


def fused_linear(x, lin, *, ln=None, activation=None, residual=None,
                 out_scale=1.0, res_scale=1.0, eps=1e-5, out_dtype=jnp.bfloat16):
    """y = [a*( act( LN(x) @ W + b ) ) + r*residual], fused in one kernel.

    `lin` is a prep_linear() dict (pre-padded bf16 weight, f32 bias).
    `ln` is a prep_ln() dict folding a LayerNorm over x's last dim into the
    prologue.  `residual` must broadcast to (..., N).
    """
    K, N = lin["k"], lin["n"]
    wp, bp = lin["w"], lin["b"]
    Kp, Np = wp.shape

    orig = x.shape
    x2 = x.reshape(-1, K)
    M = x2.shape[0]

    t = _tune()
    TK = Kp if ln is not None else _pick_tile(Kp, t["max_tk"])
    TN = _pick_tile(Np, t["max_tn"])
    TM = min(t["max_tm"], _round_up(M, 8))
    Mp = _round_up(M, TM)
    nm, nn, nk = Mp // TM, Np // TN, Kp // TK

    # Keep >=2 parallel tiles when possible (v7x has 2 TensorCores sharded
    # over "parallel" grid axes; a (1,1,k) grid leaves one idle).
    if nm * nn == 1 and M > 8:
        TM = _round_up(-(-M // 2), 8)
        Mp = _round_up(M, TM)
        nm = Mp // TM

    xp = jnp.pad(x2, ((0, Mp - M), (0, Kp - K)))

    inputs = [xp, wp, bp]
    in_specs = [
        pl.BlockSpec((TM, TK), lambda i, j, k: (i, k)),
        pl.BlockSpec((TK, TN), lambda i, j, k: (k, j)),
        pl.BlockSpec((1, TN), lambda i, j, k: (0, j)),
    ]
    if ln is not None:
        inputs += [ln["g"], ln["b"]]
        in_specs += [pl.BlockSpec((1, TK), lambda i, j, k: (0, k)),
                     pl.BlockSpec((1, TK), lambda i, j, k: (0, k))]
    if residual is not None:
        rp = jnp.pad(residual.reshape(-1, N), ((0, Mp - M), (0, Np - N)))
        inputs += [rp]
        in_specs += [pl.BlockSpec((TM, TN), lambda i, j, k: (i, j))]

    kernel = _make_linear_kernel(
        has_ln=ln is not None, has_res=residual is not None,
        activation=activation, out_scale=out_scale, res_scale=res_scale,
        n_k=nk, true_k=K, pad_k=Kp, eps=eps)

    scratch = [pltpu.VMEM((TM, TN), jnp.float32)] if nk > 1 else []

    out = pl.pallas_call(
        kernel,
        out_shape=jax.ShapeDtypeStruct((Mp, Np), out_dtype),
        grid_spec=pltpu.PrefetchScalarGridSpec(
            num_scalar_prefetch=0,
            grid=(nm, nn, nk),
            in_specs=in_specs,
            out_specs=pl.BlockSpec((TM, TN), lambda i, j, k: (i, j)),
            scratch_shapes=scratch,
        ),
        compiler_params=pltpu.CompilerParams(
            dimension_semantics=("parallel", "parallel", "arbitrary"),
            vmem_limit_bytes=t["vmem"],
        ),
    )(*inputs)
    out = out[:M, :N]
    return out.reshape(orig[:-1] + (N,))


# ----------------------------------------------------------------------------
# Standalone LayerNorm (encoder's final norm feeds multiple consumers, so it
# can't be fused into a single downstream linear).  Grid-tiled over rows.
# ----------------------------------------------------------------------------

def _layernorm_kernel(x_ref, g_ref, b_ref, o_ref, *, eps):
    x = x_ref[...].astype(jnp.float32)
    mean = jnp.mean(x, axis=-1, keepdims=True)
    var = jnp.mean((x - mean) ** 2, axis=-1, keepdims=True)
    y = (x - mean) * jax.lax.rsqrt(var + eps)
    o_ref[...] = (y * g_ref[...] + b_ref[...]).astype(o_ref.dtype)


def layernorm(x, g, b, eps=1e-5, out_dtype=jnp.bfloat16):
    orig = x.shape
    D = orig[-1]
    x2 = x.reshape(-1, D)
    M = x2.shape[0]
    TM = min(512, _round_up(M, 8))
    Mp = _round_up(M, TM)
    nm = Mp // TM
    if nm == 1 and M > 8:
        TM = _round_up(-(-M // 2), 8)
        Mp = _round_up(M, TM)
        nm = Mp // TM
    xp = jnp.pad(x2, ((0, Mp - M), (0, 0)))
    out = pl.pallas_call(
        functools.partial(_layernorm_kernel, eps=eps),
        out_shape=jax.ShapeDtypeStruct((Mp, D), out_dtype),
        grid_spec=pltpu.PrefetchScalarGridSpec(
            num_scalar_prefetch=0,
            grid=(nm,),
            in_specs=[pl.BlockSpec((TM, D), lambda i: (i, 0)),
                      pl.BlockSpec((1, D), lambda i: (0, 0)),
                      pl.BlockSpec((1, D), lambda i: (0, 0))],
            out_specs=pl.BlockSpec((TM, D), lambda i: (i, 0)),
        ),
        compiler_params=pltpu.CompilerParams(
            dimension_semantics=("parallel",),
            vmem_limit_bytes=_tune()["vmem"],
        ),
    )(xp, g.astype(jnp.float32).reshape(1, D), b.astype(jnp.float32).reshape(1, D))
    return out[:M].reshape(orig)


# ----------------------------------------------------------------------------
# Flash-style multi-head attention: grid = (B*H "parallel", KV-tile "arbitrary"),
# online softmax with f32 m/l/acc scratch, bf16 MXU matmuls, EUP reciprocal.
# ----------------------------------------------------------------------------

def _flash_attn_kernel(q_ref, k_ref, v_ref, o_ref, m_ref, l_ref, acc_ref,
                       *, scale, kv_len, tkv, n_kv):
    kv = pl.program_id(1)

    @pl.when(kv == 0)
    def _():
        m_ref[...] = jnp.full_like(m_ref, -jnp.inf)
        l_ref[...] = jnp.zeros_like(l_ref)
        acc_ref[...] = jnp.zeros_like(acc_ref)

    q = q_ref[...]                                   # (1, Sq, Dh) bf16
    k = k_ref[...]                                   # (1, TKV, Dh) bf16
    v = v_ref[...]
    s = jnp.einsum("bqd,bkd->bqk", q, k,
                   preferred_element_type=jnp.float32) * scale
    # mask padded key positions
    col = jax.lax.broadcasted_iota(jnp.int32, s.shape, 2) + kv * tkv
    s = jnp.where(col < kv_len, s, -1e30)

    m_prev = m_ref[...]
    m_new = jnp.maximum(m_prev, jnp.max(s, axis=-1, keepdims=True))
    alpha = jnp.exp(m_prev - m_new)                  # f32 (v5e-safe)
    p = jnp.exp(s - m_new)
    l_ref[...] = alpha * l_ref[...] + jnp.sum(p, axis=-1, keepdims=True)
    acc_ref[...] = alpha * acc_ref[...] + jnp.einsum(
        "bqk,bkd->bqd", p.astype(jnp.bfloat16), v,
        preferred_element_type=jnp.float32)
    m_ref[...] = m_new

    @pl.when(kv == n_kv - 1)
    def _():
        o_ref[...] = (acc_ref[...] *
                      pl.reciprocal(l_ref[...], approx=True)).astype(o_ref.dtype)


def attention(q, k, v, scale):
    """q: (BH, Sq, Dh), k/v: (BH, Sk, Dh) -> (BH, Sq, Dh), bf16."""
    BH, Sq, Dh = q.shape
    Sk = k.shape[1]
    Sqp = _round_up(Sq, 8)
    TKV = min(512, _round_up(Sk, 8))
    Skp = _round_up(Sk, TKV)
    nkv = Skp // TKV

    qp = jnp.pad(q.astype(jnp.bfloat16), ((0, 0), (0, Sqp - Sq), (0, 0)))
    kp = jnp.pad(k.astype(jnp.bfloat16), ((0, 0), (0, Skp - Sk), (0, 0)))
    vp = jnp.pad(v.astype(jnp.bfloat16), ((0, 0), (0, Skp - Sk), (0, 0)))

    out = pl.pallas_call(
        functools.partial(_flash_attn_kernel, scale=scale, kv_len=Sk,
                          tkv=TKV, n_kv=nkv),
        out_shape=jax.ShapeDtypeStruct((BH, Sqp, Dh), jnp.bfloat16),
        grid_spec=pltpu.PrefetchScalarGridSpec(
            num_scalar_prefetch=0,
            grid=(BH, nkv),
            in_specs=[pl.BlockSpec((1, Sqp, Dh), lambda b, kv: (b, 0, 0)),
                      pl.BlockSpec((1, TKV, Dh), lambda b, kv: (b, kv, 0)),
                      pl.BlockSpec((1, TKV, Dh), lambda b, kv: (b, kv, 0))],
            out_specs=pl.BlockSpec((1, Sqp, Dh), lambda b, kv: (b, 0, 0)),
            scratch_shapes=[pltpu.VMEM((1, Sqp, 1), jnp.float32),
                            pltpu.VMEM((1, Sqp, 1), jnp.float32),
                            pltpu.VMEM((1, Sqp, Dh), jnp.float32)],
        ),
        compiler_params=pltpu.CompilerParams(
            dimension_semantics=("parallel", "arbitrary"),
            vmem_limit_bytes=_tune()["vmem"],
        ),
    )(qp, kp, vp)
    return out[:, :Sq, :]


# ----------------------------------------------------------------------------
# Model pieces (glue in JAX, compute in the fused Pallas kernels above)
# ----------------------------------------------------------------------------

def patch_embed(imgs, lin, pos, p):
    """Conv2d(C,E,kernel=p,stride=p) as a patch matmul, + pos-embed add fused."""
    N, C, H, W = imgs.shape
    hp, wp = H // p, W // p
    x = imgs.reshape(N, C, hp, p, wp, p)
    x = jnp.transpose(x, (0, 2, 4, 1, 3, 5))             # (N, hp, wp, C, p, p)
    x = x.reshape(N, hp * wp, C * p * p)
    pos_b = jnp.broadcast_to(pos, (N, hp * wp, lin["n"]))
    return fused_linear(x, lin, residual=pos_b)           # (N, L, E) + pos fused


def unpatchify(x, p):
    N, L, _ = x.shape
    h = w = int(round(L ** 0.5))
    x = x.reshape(N, h, w, p, p, 3)
    x = jnp.transpose(x, (0, 5, 1, 3, 2, 4))               # nhwpqc -> nchpwq
    return x.reshape(N, 3, h * p, w * p)


def random_masking(x, mask_ratio, key):
    N, L, D = x.shape
    len_keep = int(L * (1 - mask_ratio))
    noise = jax.random.uniform(key, (N, L))
    ids_shuffle = jnp.argsort(noise, axis=1)
    ids_restore = jnp.argsort(ids_shuffle, axis=1)
    ids_keep = ids_shuffle[:, :len_keep]
    x_masked = jnp.take_along_axis(x, ids_keep[:, :, None], axis=1)
    mask = jnp.ones((N, L), jnp.float32)
    mask = mask.at[:, :len_keep].set(0.0)
    mask = jnp.take_along_axis(mask, ids_restore, axis=1)
    return x_masked, mask, ids_restore


def vit_block(x, p, num_heads):
    """timm-style Block: LN1+QKV | flash-attn | proj+res | LN2+fc1+GELU | fc2+res."""
    B, L, E = x.shape
    Dh = E // num_heads

    qkv = fused_linear(x, p["qkv"], ln=p["norm1"])          # (B, L, 3E) bf16
    # TODO(synk): fold the head split into the attention BlockSpec to avoid
    # these XLA transposes (now half cost since activations are bf16).
    qkv = qkv.reshape(B, L, 3, num_heads, Dh)
    qkv = jnp.transpose(qkv, (2, 0, 3, 1, 4))               # (3, B, H, L, Dh)
    q = qkv[0].reshape(B * num_heads, L, Dh)
    k = qkv[1].reshape(B * num_heads, L, Dh)
    v = qkv[2].reshape(B * num_heads, L, Dh)
    o = attention(q, k, v, scale=Dh ** -0.5)                # (BH, L, Dh)
    o = o.reshape(B, num_heads, L, Dh).transpose(0, 2, 1, 3).reshape(B, L, E)

    x = fused_linear(o, p["proj"], residual=x)               # proj + add
    h = fused_linear(x, p["fc1"], ln=p["norm2"], activation="gelu")
    x = fused_linear(h, p["fc2"], residual=x)                # fc2 + add
    return x


def scene_multihead_attention(query, key_, value, p, num_heads):
    """nn.MultiheadAttention with default batch_first=False: inputs (seq, batch, E)."""
    Sq, B, E = query.shape
    Sk = key_.shape[0]
    Dh = E // num_heads
    q = fused_linear(query, p["q"])
    k = fused_linear(key_, p["k"])
    v = fused_linear(value, p["v"])
    q = q.reshape(Sq, B * num_heads, Dh).transpose(1, 0, 2)
    k = k.reshape(Sk, B * num_heads, Dh).transpose(1, 0, 2)
    v = v.reshape(Sk, B * num_heads, Dh).transpose(1, 0, 2)
    o = attention(q, k, v, scale=Dh ** -0.5)                 # (B*H, Sq, Dh)
    o = o.transpose(1, 0, 2).reshape(Sq, B, E)
    return fused_linear(o, p["out"])


def forward_encoder(imgs, params, cfg, key, mask_ratio):
    x = patch_embed(imgs, params["patch"], params["pos_embed"][:, 1:, :],
                    cfg["patch_size"])
    x, mask, ids_restore = random_masking(x, mask_ratio, key)
    cls_tok = params["cls_token"] + params["pos_embed"][:, :1, :]
    cls_toks = jnp.broadcast_to(cls_tok, (x.shape[0], 1, cfg["embed_dim"]))
    x = jnp.concatenate([cls_toks.astype(x.dtype), x], axis=1)
    for blk in params["blocks"]:
        x = vit_block(x, blk, cfg["num_heads"])
    # final norm output feeds scene-attn, the 0.1/0.9 fusion AND the decoder,
    # so it stays a standalone (row-tiled) kernel.
    x = layernorm(x, params["norm_g"], params["norm_b"])
    return x, mask, ids_restore


def forward_decoder(x, ids_restore, params, cfg):
    x = fused_linear(x, params["dec_embed"])
    B = x.shape[0]
    L_full = ids_restore.shape[1]
    n_mask = L_full + 1 - x.shape[1]
    if n_mask > 0:
        mask_tokens = jnp.broadcast_to(params["mask_token"].astype(x.dtype),
                                       (B, n_mask, cfg["dec_dim"]))
        x_ = jnp.concatenate([x[:, 1:, :], mask_tokens], axis=1)
    else:
        x_ = x[:, 1:, :]
    x_ = jnp.take_along_axis(x_, ids_restore[:, :, None], axis=1)
    x = jnp.concatenate([x[:, :1, :], x_], axis=1)
    x = x + params["dec_pos_embed"].astype(x.dtype)
    for blk in params["dec_blocks"]:
        x = vit_block(x, blk, cfg["dec_num_heads"])
    # decoder_norm fused into decoder_pred; final prediction emitted in f32
    x = fused_linear(x, params["dec_pred"], ln=params["dec_norm"],
                     out_dtype=jnp.float32)
    return x[:, 1:, :]


def forward(imgs, params, cfg, mask_key, mask_ratio=0.0):
    # TODO(synk): pretrained ResNet-50 backbone from init_classer has no in-script
    # equivalent; replaced by a deterministic global-average-pool + Linear head.
    # Degenerate (K=3, N=8) matmul stays plain jnp (per perf review).
    feats = jnp.mean(imgs, axis=(2, 3))                               # (N, C)
    scene_logits = feats @ params["cls_w"] + params["cls_b"]          # (N, class_num)
    scene_labels = jnp.argmax(scene_logits, axis=1)
    scene_embed = params["scene_embedding"][scene_labels][:, None, :]  # (N, 1, E)

    latent, mask, ids_restore = forward_encoder(imgs, params, cfg, mask_key, mask_ratio)

    # nn.MultiheadAttention default batch_first=False: dim0 = sequence, dim1 = batch,
    # faithfully reproducing the (quirky) semantics of the reference forward().
    query = jnp.broadcast_to(
        scene_embed, (scene_embed.shape[0], latent.shape[1], cfg["embed_dim"]))
    attn_output = scene_multihead_attention(query, latent, latent,
                                            params["scene_attn"], num_heads=8)
    # scene_norm + fc1 + GELU fused; fc2 + 0.1/0.9 feature fusion fused.
    h = fused_linear(attn_output, params["scene_mlp_fc1"],
                     ln=params["scene_norm"], activation="gelu")
    fused = fused_linear(h, params["scene_mlp_fc2"],
                         residual=latent, out_scale=0.1, res_scale=0.9)
    # nn.Dropout(0.1) -> identity (inference semantics)

    pred1 = forward_decoder(fused, ids_restore, params, cfg)
    pred = unpatchify(pred1, cfg["patch_size"])

    # pred_conv: Conv2d(3, 1, 1) == per-pixel weighted channel sum; degenerate
    # (K=3, N=1) matmul -> plain jnp VPU op, not a Pallas call (per perf review).
    wc = params["pred_conv_w"][:, 0]                                   # (3,)
    pred_out = jnp.einsum("nchw,c->nhw", pred, wc) + params["pred_conv_b"][0]
    pred_out = pred_out[:, None, :, :]
    return pred_out, pred1, mask, scene_logits


# ----------------------------------------------------------------------------
# Deterministic parameter init (synthetic; shapes follow the module's __init__).
# Weights are pre-padded/pre-cast here (once), per the performance review.
# ----------------------------------------------------------------------------

def init_params(key, cfg):
    E = cfg["embed_dim"]
    Dd = cfg["dec_dim"]
    p = cfg["patch_size"]
    C = cfg["in_chans"]
    L = cfg["num_patches"]
    mlp = int(cfg["mlp_ratio"] * E)
    dmlp = int(cfg["mlp_ratio"] * Dd)
    keys = iter(jax.random.split(key, 512))

    def rnd(shape, scale=0.02):
        return jax.random.normal(next(keys), shape, jnp.float32) * scale

    def lin(k_dim, n_dim):
        return prep_linear(rnd((k_dim, n_dim)), rnd((n_dim,)))

    def ln_p(dim):
        return prep_ln(jnp.ones((dim,), jnp.float32), jnp.zeros((dim,), jnp.float32))

    def block_params(dim, hidden):
        return {
            "norm1": ln_p(dim),
            "qkv": lin(dim, 3 * dim),
            "proj": lin(dim, dim),
            "norm2": ln_p(dim),
            "fc1": lin(dim, hidden),
            "fc2": lin(hidden, dim),
        }

    # NOTE: synthetic scene_attn layout (E, 3E); loading real torch checkpoints
    # (packed (3E, E), x @ W^T) would require a transpose + re-slice before prep.
    in_w = rnd((E, 3 * E))
    in_b = rnd((3 * E,))

    return {
        "patch": lin(C * p * p, E),
        "cls_token": rnd((1, 1, E)), "pos_embed": rnd((1, L + 1, E)),
        "blocks": [block_params(E, mlp) for _ in range(cfg["depth"])],
        "norm_g": jnp.ones((E,), jnp.float32), "norm_b": jnp.zeros((E,), jnp.float32),
        "dec_embed": lin(E, Dd),
        "mask_token": rnd((1, 1, Dd)), "dec_pos_embed": rnd((1, L + 1, Dd)),
        "dec_blocks": [block_params(Dd, dmlp) for _ in range(cfg["dec_depth"])],
        "dec_norm": ln_p(Dd),
        "dec_pred": lin(Dd, p * p * C),
        "pred_conv_w": rnd((3, 1)), "pred_conv_b": rnd((1,)),
        "cls_w": rnd((C, cfg["class_num"])), "cls_b": rnd((cfg["class_num"],)),
        "scene_embedding": rnd((cfg["class_num"], E)),
        "scene_attn": {
            "q": prep_linear(in_w[:, :E], in_b[:E]),
            "k": prep_linear(in_w[:, E:2 * E], in_b[E:2 * E]),
            "v": prep_linear(in_w[:, 2 * E:], in_b[2 * E:]),
            "out": lin(E, E),
        },
        "scene_norm": ln_p(E),
        "scene_mlp_fc1": lin(E, 2 * E),
        "scene_mlp_fc2": lin(2 * E, E),
    }


# ----------------------------------------------------------------------------
if __name__ == "__main__":
    cfg = dict(
        img_size=16, patch_size=4, in_chans=3,
        embed_dim=32, depth=2, num_heads=4,
        dec_dim=32, dec_depth=2, dec_num_heads=4,
        mlp_ratio=4.0, class_num=8,
    )
    cfg["num_patches"] = (cfg["img_size"] // cfg["patch_size"]) ** 2

    root = jax.random.PRNGKey(0)
    pkey, xkey, mkey = jax.random.split(root, 3)
    params = init_params(pkey, cfg)
    imgs = jax.random.normal(xkey, (2, cfg["in_chans"], cfg["img_size"], cfg["img_size"]),
                             jnp.float32)

    pred, pred1, mask, scene_logits = forward(imgs, params, cfg, mkey, mask_ratio=0.0)
    jax.block_until_ready((pred, pred1, mask, scene_logits))

    assert pred.shape == (2, 1, cfg["img_size"], cfg["img_size"])
    assert pred1.shape == (2, cfg["num_patches"], cfg["patch_size"] ** 2 * 3)
    assert mask.shape == (2, cfg["num_patches"])
    assert scene_logits.shape == (2, cfg["class_num"])
    assert bool(jnp.all(jnp.isfinite(pred)))
    assert bool(jnp.all(jnp.isfinite(pred1)))
    assert bool(jnp.all(jnp.isfinite(scene_logits)))

    print("KERNEL_OK")
</pallas_src>

<mosaic_0001>
module attributes {stable_mosaic.version = 11 : i64} {
  func.func @kernel(%arg0: i32, %arg1: i32, %arg2: i32, %arg3: memref<16x128xf32, #tpu.memory_space<vmem>>, %arg4: memref<128x128xbf16, #tpu.memory_space<vmem>>, %arg5: memref<1x128xf32, #tpu.memory_space<vmem>>, %arg6: memref<16x128xf32, #tpu.memory_space<vmem>>, %arg7: memref<16x128xbf16, #tpu.memory_space<vmem>>) attributes {dimension_semantics = [#tpu.dimension_semantics<parallel>, #tpu.dimension_semantics<parallel>, #tpu.dimension_semantics<arbitrary>], iteration_bounds = array<i64: 2, 1, 1>, scalar_prefetch = 0 : i64, scratch_operands = 0 : i64, tpu.core_type = #tpu.core_type<tc>, window_params = [{transform_indices = @transform_0, window_bounds = array<i64: 16, 128>}, {transform_indices = @transform_1, window_bounds = array<i64: 128, 128>}, {transform_indices = @transform_2, window_bounds = array<i64: 1, 128>}, {transform_indices = @transform_3, window_bounds = array<i64: 16, 128>}, {transform_indices = @transform_4, window_bounds = array<i64: 16, 128>}]} {
    %c0 = arith.constant 0 : index
    %c0_0 = arith.constant 0 : index
    %0 = vector.load %arg3[%c0, %c0_0] : memref<16x128xf32, #tpu.memory_space<vmem>>, vector<16x128xf32>
    %1 = arith.truncf %0 : vector<16x128xf32> to vector<16x128xbf16>
    %c0_1 = arith.constant 0 : index
    %c0_2 = arith.constant 0 : index
    %2 = vector.load %arg4[%c0_1, %c0_2] : memref<128x128xbf16, #tpu.memory_space<vmem>>, vector<128x128xbf16>
    %cst = arith.constant dense<0.000000e+00> : vector<16x128xf32>
    %3 = tpu.matmul %1, %2, %cst {dimension_numbers = #tpu.dot_dimension_numbers<[1], [0], [0], [1], [0, 0, 1, 1], [], []>} : vector<16x128xbf16>, vector<128x128xbf16>, vector<16x128xf32> -> vector<16x128xf32>
    %c0_3 = arith.constant 0 : index
    %c0_4 = arith.constant 0 : index
    %4 = vector.load %arg5[%c0_3, %c0_4] : memref<1x128xf32, #tpu.memory_space<vmem>>, vector<1x128xf32>
    %5 = vector.broadcast %4 : vector<1x128xf32> to vector<16x128xf32>
    %6 = arith.addf %3, %5 : vector<16x128xf32>
    %cst_5 = arith.constant 1.000000e+00 : f32
    %7 = vector.broadcast %cst_5 : f32 to vector<16x128xf32>
    %8 = arith.mulf %7, %6 : vector<16x128xf32>
    %c0_6 = arith.constant 0 : index
    %c0_7 = arith.constant 0 : index
    %9 = vector.load %arg6[%c0_6, %c0_7] : memref<16x128xf32, #tpu.memory_space<vmem>>, vector<16x128xf32>
    %cst_8 = arith.constant 1.000000e+00 : f32
    %10 = vector.broadcast %cst_8 : f32 to vector<16x128xf32>
    %11 = arith.mulf %10, %9 : vector<16x128xf32>
    %12 = arith.addf %8, %11 : vector<16x128xf32>
    %13 = arith.truncf %12 : vector<16x128xf32> to vector<16x128xbf16>
    %c0_9 = arith.constant 0 : index
    %c0_10 = arith.constant 0 : index
    %14 = vector.load %arg7[%c0_9, %c0_10] : memref<16x128xbf16, #tpu.memory_space<vmem>>, vector<16x128xbf16>
    tpu.vector_store %arg7[%c0_9, %c0_10], %13 {strides = array<i32>} : memref<16x128xbf16, #tpu.memory_space<vmem>>, vector<16x128xbf16>,
    return
  }
  func.func @transform_0(%arg0: i32, %arg1: i32, %arg2: i32) -> (i32, i32) {
    %c0_i32 = arith.constant 0 : i32
    return %arg0, %arg2 : i32, i32
  }
  func.func @transform_1(%arg0: i32, %arg1: i32, %arg2: i32) -> (i32, i32) {
    %c0_i32 = arith.constant 0 : i32
    return %arg2, %arg1 : i32, i32
  }
  func.func @transform_2(%arg0: i32, %arg1: i32, %arg2: i32) -> (i32, i32) {
    %c0_i32 = arith.constant 0 : i32
    %c0_i32_0 = arith.constant 0 : i32
    return %c0_i32, %arg1 : i32, i32
  }
  func.func @transform_3(%arg0: i32, %arg1: i32, %arg2: i32) -> (i32, i32) {
    %c0_i32 = arith.constant 0 : i32
    return %arg0, %arg1 : i32, i32
  }
  func.func @transform_4(%arg0: i32, %arg1: i32, %arg2: i32) -> (i32, i32) {
    %c0_i32 = arith.constant 0 : i32
    return %arg0, %arg1 : i32, i32
  }
}

</mosaic_0001>

<llo_original>
// kernel: tpu_custom_call.1
$region0: #{tpu_custom_call.1}
  #allocation0 [shape = 'u32[]', space=smem, size = 0x4, offset = 0x4, fixed_abs, tag = 'smem constant byte address 0x4 - core index']
  #allocation1 [shape = 'u32[72,128]{1,0:T(1,128)}', space=vmem, size = 0x9000, scoped, tag = 'internal scratch']
  %s0 = inlined_call_operand.hbm [shape: f32[32,128], index: 0, kind: input, shape index: {}]
  %s1 = inlined_call_operand.hbm [shape: bf16[128,128], index: 1, kind: input, shape index: {}]
  %s2 = inlined_call_operand.vmem [shape: f32[1,128], index: 2, kind: input, shape index: {}]
  %s3 = inlined_call_operand.hbm [shape: f32[32,128], index: 3, kind: input, shape index: {}]
  %s4 = inlined_call_operand.hbm [shape: bf16[32,128], index: 4, kind: output, shape index: {}]
  %s5 = sld [smem:[#allocation0]]
  $region61: #{tpu_custom_call.1} parent=0
    _
  %s7 = ssub.s32 1, %s5
  %s8 = scalar_select 0, %s7, %s5
  $region1: #{tpu_custom_call.1} parent=0
    #allocation2 [shape = 'u8[16384]{0}', space=vmem, size = 0x4000, scoped, tag = 'input window, operand 0']
    #allocation3 [shape = 's32[2]{0}', space=sflag, size = 0x8, scoped, tag = 'scoped memory for tpu_custom_call.1']
    #allocation4 [shape = 's32[2]{0}', space=sflag, size = 0x8, scoped, tag = 'scoped memory for tpu_custom_call.1']
    #allocation5 [shape = 'u8[32768]{0}', space=vmem, size = 0x8000, scoped, tag = 'input window, operand 1, single buffered']
    #allocation6 [shape = 's32[1]{0}', space=sflag, size = 0x4, scoped, tag = 'scoped memory for tpu_custom_call.1']
    #allocation7 [shape = 'u8[16384]{0}', space=vmem, size = 0x4000, scoped, tag = 'input window, operand 3']
    #allocation8 [shape = 'u8[8192]{0}', space=vmem, size = 0x2000, scoped, tag = 'output window, operand 0']
    %9 = vsyncpa [#allocation3], 0
    %s10 = scalar_lea.sflag [#allocation3], 1
    %11 = vsyncpa %s10, 0
    %12 = vsyncpa [#allocation6], 0
    %13 = vsyncpa [#allocation4], 0
    %s14 = scalar_lea.sflag [#allocation4], 1
    %15 = vsyncpa %s14, 0
    loop: start=0, step=1, limit=4
    $region2: #{tpu_custom_call.1} parent=1 // loop_pre_header
      _
    $region3: #{tpu_custom_call.1} parent=1 // loop_header
      %s17 = sphi 0, %s21
      %p18 = scmp.ge.s32.totalorder %s17, 4
      %s24 = sphi 0, %s43
      %s25 = sphi 0, %s39
      %s26 = sphi 0, %s35
      %s27 = sphi 0, %s24
      %s28 = sphi 0, %s25
      %s29 = sphi 0, %s26
      %s30 = sphi 0, %s27
      %s31 = sphi 0, %s28
      %s32 = sphi 0, %s29
      %s48 = sphi 0, %s50
      %s51 = sphi 0, %s48
      %s52 = sphi 0, %s51
      %s68 = sphi 0, %s52
      %s76 = sphi 0, %s78
      %s79 = sphi 0, %s76
      %s80 = sphi 0, %s79
      %s96 = sphi 0, %s80
      %s102 = sphi 0, %s104
      %s105 = sphi 0, %s102
      %s106 = sphi 0, %s105
      %s122 = sphi 0, %s106
      %s130 = sphi 0, %s132
      %s133 = sphi 0, %s130
      %s134 = sphi 0, %s133
      %s150 = sphi 0, %s134
      %s158 = sphi 0, %s160
      %s161 = sphi 0, %s158
      %s162 = sphi 0, %s161
      %s178 = sphi 0, %s162
    $region4: #{tpu_custom_call.1} parent=1 // loop_header_branch
      %20 = sbr.rel (%p18) target = $region8
    $region5: #{tpu_custom_call.1} parent=1 // loop_body
      %s22 = ssub.s32 %s17, 1
      %s23 = ssub.s32 %s17, 2
      %s33 = sadd.s32 1, %s26
      %p34 = scmp.ge.s32.totalorder %s33, 1
      %s35 = scalar_select %p34, 0, %s33
      %s36 = sadd.s32 1, %s25
      %s37 = scalar_select %p34, %s36, %s25
      %p38 = scmp.ge.s32.totalorder %s37, 1
      %s39 = scalar_select %p38, 0, %s37
      %s40 = sadd.s32 1, %s24
      %s41 = scalar_select %p38, %s40, %s24
      %p42 = scmp.ge.s32.totalorder %s41, 2
      %s43 = scalar_select %p42, 0, %s41
      %s44 = ssub.s32 %s24, %s43
      %s45 = ssub.s32 %s26, %s35
      %s46 = sor.u32 %s44, %s45
      %p47 = scmp.eq.s32.totalorder %s46, 0
      %s49 = sadd.s32 %s48, 1
      %s50 = scalar_select %p47, %s48, %s49
      %p53 = pneg %p47
      %p54 = scmp.eq.s32.totalorder %s17, 1
      %p55 = por %p53, %p54
      %p56 = scmp.ne.s32.totalorder %s48, %s51
      %p57 = scmp.eq.s32.totalorder %s17, 0
      %p58 = por %p56, %p57
      %p59 = scmp.ne.s32.totalorder %s48, %s51
      %p60 = scmp.eq.s32.totalorder %s22, 1
      %p61 = por %p59, %p60
      %p62 = scmp.ne.s32.totalorder %s51, %s52
      %p63 = scmp.eq.s32.totalorder %s22, 0
      %p64 = por %p62, %p63
      %p65 = scmp.ne.s32.totalorder %s51, %s52
      %p66 = scmp.eq.s32.totalorder %s23, 1
      %p67 = por %p65, %p66
      %p69 = scmp.ne.s32.totalorder %s52, %s68
      %p70 = scmp.eq.s32.totalorder %s23, 0
      %p71 = por %p69, %p70
      %s72 = ssub.s32 %s26, %s35
      %s73 = ssub.s32 %s25, %s39
      %s74 = sor.u32 %s72, %s73
      %p75 = scmp.eq.s32.totalorder %s74, 0
      %s77 = sadd.s32 %s76, 1
      %s78 = scalar_select %p75, %s76, %s77
      %p81 = pneg %p75
      %p82 = scmp.eq.s32.totalorder %s17, 1
      %p83 = por %p81, %p82
      %p84 = scmp.ne.s32.totalorder %s76, %s79
      %p85 = scmp.eq.s32.totalorder %s17, 0
      %p86 = por %p84, %p85
      %p87 = scmp.ne.s32.totalorder %s76, %s79
      %p88 = scmp.eq.s32.totalorder %s22, 1
      %p89 = por %p87, %p88
      %p90 = scmp.ne.s32.totalorder %s79, %s80
      %p91 = scmp.eq.s32.totalorder %s22, 0
      %p92 = por %p90, %p91
      %p93 = scmp.ne.s32.totalorder %s79, %s80
      %p94 = scmp.eq.s32.totalorder %s23, 1
      %p95 = por %p93, %p94
      %p97 = scmp.ne.s32.totalorder %s80, %s96
      %p98 = scmp.eq.s32.totalorder %s23, 0
      %p99 = por %p97, %p98
      %s100 = ssub.s32 %s25, %s39
      %p101 = scmp.eq.s32.totalorder %s100, 0
      %s103 = sadd.s32 %s102, 1
      %s104 = scalar_select %p101, %s102, %s103
      %p107 = pneg %p101
      %p108 = scmp.eq.s32.totalorder %s17, 1
      %p109 = por %p107, %p108
      %p110 = scmp.ne.s32.totalorder %s102, %s105
      %p111 = scmp.eq.s32.totalorder %s17, 0
      %p112 = por %p110, %p111
      %p113 = scmp.ne.s32.totalorder %s102, %s105
      %p114 = scmp.eq.s32.totalorder %s22, 1
      %p115 = por %p113, %p114
      %p116 = scmp.ne.s32.totalorder %s105, %s106
      %p117 = scmp.eq.s32.totalorder %s22, 0
      %p118 = por %p116, %p117
      %p119 = scmp.ne.s32.totalorder %s105, %s106
      %p120 = scmp.eq.s32.totalorder %s23, 1
      %p121 = por %p119, %p120
      %p123 = scmp.ne.s32.totalorder %s106, %s122
      %p124 = scmp.eq.s32.totalorder %s23, 0
      %p125 = por %p123, %p124
      %s126 = ssub.s32 %s24, %s43
      %s127 = ssub.s32 %s25, %s39
      %s128 = sor.u32 %s126, %s127
      %p129 = scmp.eq.s32.totalorder %s128, 0
      %s131 = sadd.s32 %s130, 1
      %s132 = scalar_select %p129, %s130, %s131
      %p135 = pneg %p129
      %p136 = scmp.eq.s32.totalorder %s17, 1
      %p137 = por %p135, %p136
      %p138 = scmp.ne.s32.totalorder %s130, %s133
      %p139 = scmp.eq.s32.totalorder %s17, 0
      %p140 = por %p138, %p139
      %p141 = scmp.ne.s32.totalorder %s130, %s133
      %p142 = scmp.eq.s32.totalorder %s22, 1
      %p143 = por %p141, %p142
      %p144 = scmp.ne.s32.totalorder %s133, %s134
      %p145 = scmp.eq.s32.totalorder %s22, 0
      %p146 = por %p144, %p145
      %p147 = scmp.ne.s32.totalorder %s133, %s134
      %p148 = scmp.eq.s32.totalorder %s23, 1
      %p149 = por %p147, %p148
      %p151 = scmp.ne.s32.totalorder %s134, %s150
      %p152 = scmp.eq.s32.totalorder %s23, 0
      %p153 = por %p151, %p152
      %s154 = ssub.s32 %s24, %s43
      %s155 = ssub.s32 %s25, %s39
      %s156 = sor.u32 %s154, %s155
      %p157 = scmp.eq.s32.totalorder %s156, 0
      %s159 = sadd.s32 %s158, 1
      %s160 = scalar_select %p157, %s158, %s159
      %p163 = pneg %p157
      %p164 = scmp.eq.s32.totalorder %s17, 1
      %p165 = por %p163, %p164
      %p166 = scmp.ne.s32.totalorder %s158, %s161
      %p167 = scmp.eq.s32.totalorder %s17, 0
      %p168 = por %p166, %p167
      %p169 = scmp.ne.s32.totalorder %s158, %s161
      %p170 = scmp.eq.s32.totalorder %s22, 1
      %p171 = por %p169, %p170
      %p172 = scmp.ne.s32.totalorder %s161, %s162
      %p173 = scmp.eq.s32.totalorder %s22, 0
      %p174 = por %p172, %p173
      %p175 = scmp.ne.s32.totalorder %s161, %s162
      %p176 = scmp.eq.s32.totalorder %s23, 1
      %p177 = por %p175, %p176
      %p179 = scmp.ne.s32.totalorder %s162, %s178
      %p180 = scmp.eq.s32.totalorder %s23, 0
      %p181 = por %p179, %p180
      %p182 = scmp.le.s32.totalorder 1, %s17
      %p183 = scmp.lt.s32.totalorder %s17, 3
      %p184 = pnand %p182, %p183
      %p185 = pneg %p184
      // Predicated region
      $region9: #{tpu_custom_call.1} parent=5 // pred_check
        _
      $region10: #{tpu_custom_call.1} parent=5 // pred_check_branch
        %187 = sbr.rel (%p184) target = $region12
      $region11: #{tpu_custom_call.1} parent=5 // pred_region
        %s188 = ssub.s32 %s17, 1
        // Predicated region
        $region13: #{tpu_custom_call.1} parent=11 // pred_check
          %p189 = pneg %p92
        $region14: #{tpu_custom_call.1} parent=11 // pred_check_branch
          %191 = sbr.rel (%p189) target = $region16
        $region15: #{tpu_custom_call.1} parent=11 // pred_region
          %s192 = smul.u32 16, %s29
          %194 = vsyncadd [#allocation6], 0
          %s195 = sadd.s32 %s28, %s192
          %s196 = smul.addr %s195, 4
          %s197 = scalar_lea.hbm %s1, %s196
          %s198 = sshll.u32 %s197, 4
          %s199 = int_to_ptr.hbm [resolvable:$true] %s198
          %s200 = sshll.u32 [#allocation5], 4
          %s201 = int_to_ptr.vmem [resolvable:$true] %s200
          %206 = dma.hbm_to_vmem [thread:$0]  %s199, 1024, %s201, [#allocation6], 64, 64, 4
        $region16: #{tpu_custom_call.1} parent=11 // pred_fallthru
          _
        // Predicated region
        $region17: #{tpu_custom_call.1} parent=11 // pred_check
          %p207 = pneg %p118
        $region18: #{tpu_custom_call.1} parent=11 // pred_check_branch
          %209 = sbr.rel (%p207) target = $region20
        $region19: #{tpu_custom_call.1} parent=11 // pred_region
          %p210 = scmp.lt.s32.totalorder %s28, 0
          %s211 = scalar_select %p210, %s28, 0
          %s212 = scalar_lea.vmem %s2, %s211
        $region20: #{tpu_custom_call.1} parent=11 // pred_fallthru
          _
      $region12: #{tpu_custom_call.1} parent=5 // pred_fallthru
        _
      %p213 = scmp.lt.s32.totalorder %s17, 2
      // Predicated region
      $region21: #{tpu_custom_call.1} parent=5 // pred_check
        %p214 = pneg %p213
      $region22: #{tpu_custom_call.1} parent=5 // pred_check_branch
        %216 = sbr.rel (%p214) target = $region24
      $region23: #{tpu_custom_call.1} parent=5 // pred_region
        // Predicated region
        $region25: #{tpu_custom_call.1} parent=23 // pred_check
          %p217 = pneg %p58
        $region26: #{tpu_custom_call.1} parent=23 // pred_check_branch
          %219 = sbr.rel (%p217) target = $region28
        $region27: #{tpu_custom_call.1} parent=23 // pred_region
          %s220 = sand.u32 %s17, 1
          %s221 = scalar_lea.sflag [#allocation3], %s220
          %s222 = sand.u32 %s48, 1
          %s223 = smul.addr %s222, 16
          %s224 = scalar_lea.vmem [#allocation2], %s223
          %s225 = smul.u32 2, %s24
          %227 = vsyncadd %s221, 0
          %s228 = sadd.s32 %s26, %s225
          %s229 = smul.addr %s228, 8
          %s230 = scalar_lea.hbm %s0, %s229
          %s231 = sshll.u32 %s230, 4
          %s232 = int_to_ptr.hbm [resolvable:$true] %s231
          %s233 = sshll.u32 %s224, 4
          %s234 = int_to_ptr.vmem [resolvable:$true] %s233
          %239 = dma.hbm_to_vmem [thread:$0]  %s232, 256, %s234, %s221, 128, 128, 8
        $region28: #{tpu_custom_call.1} parent=23 // pred_fallthru
          _
        // Predicated region
        $region29: #{tpu_custom_call.1} parent=23 // pred_check
          %p240 = pneg %p140
        $region30: #{tpu_custom_call.1} parent=23 // pred_check_branch
          %242 = sbr.rel (%p240) target = $region32
        $region31: #{tpu_custom_call.1} parent=23 // pred_region
          %s243 = sand.u32 %s17, 1
          %s244 = scalar_lea.sflag [#allocation3], %s243
          %s245 = sand.u32 %s130, 1
          %s246 = smul.addr %s245, 16
          %s247 = scalar_lea.vmem [#allocation7], %s246
          %s248 = smul.u32 2, %s24
          %250 = vsyncadd %s244, 0
          %s251 = sadd.s32 %s25, %s248
          %s252 = smul.addr %s251, 8
          %s253 = scalar_lea.hbm %s3, %s252
          %s254 = sshll.u32 %s253, 4
          %s255 = int_to_ptr.hbm [resolvable:$true] %s254
          %s256 = sshll.u32 %s247, 4
          %s257 = int_to_ptr.vmem [resolvable:$true] %s256
          %262 = dma.hbm_to_vmem [thread:$0]  %s255, 256, %s257, %s244, 128, 128, 8
        $region32: #{tpu_custom_call.1} parent=23 // pred_fallthru
          _
      $region24: #{tpu_custom_call.1} parent=5 // pred_fallthru
        _
      %p263 = scmp.le.s32.totalorder 1, %s17
      %p264 = scmp.lt.s32.totalorder %s17, 3
      %p265 = pnand %p263, %p264
      %p266 = pneg %p265
      // Predicated region
      $region33: #{tpu_custom_call.1} parent=5 // pred_check
        _
      $region34: #{tpu_custom_call.1} parent=5 // pred_check_branch
        %268 = sbr.rel (%p265) target = $region36
      $region35: #{tpu_custom_call.1} parent=5 // pred_region
        %s269 = ssub.s32 %s17, 1
        %s270 = sand.u32 %s22, 1
        %s271 = scalar_lea.sflag [#allocation3], %s270
        %s272 = sand.u32 %s51, 1
        %s273 = smul.addr %s272, 16
        %s274 = scalar_lea.vmem [#allocation2], %s273
        // Predicated region
        $region37: #{tpu_custom_call.1} parent=35 // pred_check
          %p275 = pneg %p64
        $region38: #{tpu_custom_call.1} parent=35 // pred_check_branch
          %277 = sbr.rel (%p275) target = $region40
        $region39: #{tpu_custom_call.1} parent=35 // pred_region
          %279 = dma.done %s271, 256
        $region40: #{tpu_custom_call.1} parent=35 // pred_fallthru
          _
        // Predicated region
        $region41: #{tpu_custom_call.1} parent=35 // pred_check
          %p280 = pneg %p92
        $region42: #{tpu_custom_call.1} parent=35 // pred_check_branch
          %282 = sbr.rel (%p280) target = $region44
        $region43: #{tpu_custom_call.1} parent=35 // pred_region
          %284 = dma.done [#allocation6], 1024
        $region44: #{tpu_custom_call.1} parent=35 // pred_fallthru
          _
        %s285 = sand.u32 %s22, 1
        %s286 = scalar_lea.sflag [#allocation3], %s285
        %s287 = sand.u32 %s133, 1
        %s288 = smul.addr %s287, 16
        %s289 = scalar_lea.vmem [#allocation7], %s288
        // Predicated region
        $region45: #{tpu_custom_call.1} parent=35 // pred_check
          %p290 = pneg %p146
        $region46: #{tpu_custom_call.1} parent=35 // pred_check_branch
          %292 = sbr.rel (%p290) target = $region48
        $region47: #{tpu_custom_call.1} parent=35 // pred_region
          %294 = dma.done %s286, 256
        $region48: #{tpu_custom_call.1} parent=35 // pred_fallthru
          _
        %s295 = sand.u32 %s22, 1
        %s296 = scalar_lea.sflag [#allocation3], %s295
        %s297 = sand.u32 %s51, 1
        %s298 = smul.addr %s297, 16
        %s299 = scalar_lea.vmem [#allocation2], %s298
        %p300 = pneg %p64
        %p301 = pneg %p61
        %p302 = pneg %p92
        %p303 = pneg %p89
        %p304 = scmp.lt.s32.totalorder %s28, 0
        %s305 = scalar_select %p304, %s28, 0
        %s306 = scalar_lea.vmem %s2, %s305
        %p307 = pneg %p118
        %p308 = pneg %p115
        %s309 = sand.u32 %s22, 1
        %s310 = scalar_lea.sflag [#allocation3], %s309
        %s311 = sand.u32 %s133, 1
        %s312 = smul.addr %s311, 16
        %s313 = scalar_lea.vmem [#allocation7], %s312
        %p314 = pneg %p146
        %p315 = pneg %p143
        %p316 = pneg %p174
        %p317 = pneg %p171
        %s318 = sand.u32 %s161, 1
        %s319 = scalar_lea.sflag [#allocation4], %s318
        %s320 = sand.u32 %s161, 1
        %s321 = smul.addr %s320, 8
        %s322 = scalar_lea.vmem [#allocation8], %s321
        %s323 = smul.u32 2, %s27
        %s324 = smul.u32 16, %s29
        %p325 = scmp.lt.s32.totalorder %s28, 0
        %s326 = scalar_select %p325, %s28, 0
        %s327 = scalar_lea.vmem %s2, %s326
        %s328 = smul.u32 2, %s27
        %s329 = smul.u32 2, %s27
        %v330 = vld [vmem:[%s274] sm:$0xff]
        %v331 = vld [vmem:[%s274 + $0x8] sm:$0xff]
        %v332 = vpack.c.bf16 %v331, %v330
        %v333 = vld [vmem:[#allocation5] sm:$0xf]
        %v334 = vld [vmem:[#allocation5 + $0x4] sm:$0xf]
        %v335 = vld [vmem:[#allocation5 + $0x8] sm:$0xf]
        %v336 = vld [vmem:[#allocation5 + $0xc] sm:$0xf]
        %v337 = vld [vmem:[#allocation5 + $0x10] sm:$0xf]
        %v338 = vld [vmem:[#allocation5 + $0x14] sm:$0xf]
        %v339 = vld [vmem:[#allocation5 + $0x18] sm:$0xf]
        %v340 = vld [vmem:[#allocation5 + $0x1c] sm:$0xf]
        %v341 = vld [vmem:[#allocation5 + $0x20] sm:$0xf]
        %v342 = vld [vmem:[#allocation5 + $0x24] sm:$0xf]
        %v343 = vld [vmem:[#allocation5 + $0x28] sm:$0xf]
        %v344 = vld [vmem:[#allocation5 + $0x2c] sm:$0xf]
        %v345 = vld [vmem:[#allocation5 + $0x30] sm:$0xf]
        %v346 = vld [vmem:[#allocation5 + $0x34] sm:$0xf]
        %v347 = vld [vmem:[#allocation5 + $0x38] sm:$0xf]
        %v348 = vld [vmem:[#allocation5 + $0x3c] sm:$0xf]
        %v349 = vld [vmem:[%s327] sm:$0x1]
        %v351 = vperm.slane %v349, 0
        %v369 = vunpack.c.l.b16 %v333
        %v370 = vunpack.c.l.b16 %v334
        %v371 = vunpack.c.l.b16 %v335
        %v372 = vunpack.c.l.b16 %v336
        %v373 = vunpack.c.l.b16 %v337
        %v374 = vunpack.c.l.b16 %v338
        %v375 = vunpack.c.l.b16 %v339
        %v376 = vunpack.c.l.b16 %v340
        %v377 = vunpack.c.l.b16 %v341
        %v378 = vunpack.c.l.b16 %v342
        %v379 = vunpack.c.l.b16 %v343
        %v380 = vunpack.c.l.b16 %v344
        %v381 = vunpack.c.l.b16 %v345
        %v382 = vunpack.c.l.b16 %v346
        %v383 = vunpack.c.l.b16 %v347
        %v384 = vunpack.c.l.b16 %v348
        %v385 = vpack.c.b16 %v370, %v369
        %v386 = vpack.c.b16 %v372, %v371
        %v387 = vpack.c.b16 %v374, %v373
        %v388 = vpack.c.b16 %v376, %v375
        %v389 = vpack.c.b16 %v378, %v377
        %v390 = vpack.c.b16 %v380, %v379
        %v391 = vpack.c.b16 %v382, %v381
        %v392 = vpack.c.b16 %v384, %v383
        %401 = vmatpush.bf16.msra.mxu0 %v392
        %402 = vmatpush.bf16.msra.mxu0 %v391
        %403 = vmatpush.bf16.msra.mxu0 %v390
        %404 = vmatpush.bf16.msra.mxu0 %v389
        %405 = vmatpush.bf16.msra.mxu0 %v388
        %406 = vmatpush.bf16.msra.mxu0 %v387
        %407 = vmatpush.bf16.msra.mxu0 %v386
        %408 = vmatpush.bf16.msra.mxu0 %v385
        %409 = vmatmul.bf16.gmra.mxu0 %v332
        %v410 = vpop.f32.mrf.mxu0
        %v411 = vadd.f32 %v351, %v410
        %v412 = vpop.f32.mrf.mxu0
        %v413 = vadd.f32 %v351, %v412
        %414 = vdwg.mxu0
        %v415 = vld [vmem:[%s289] sm:$0xff]
        %v416 = vld [vmem:[%s289 + $0x8] sm:$0xff]
        %v417 = vadd.f32 %v411, %v415
        %v418 = vadd.f32 %v413, %v416
        %v419 = vpack.c.bf16 %v417, %v417
        %v420 = vpack.c.bf16 %v418, %v418
        %421 = vst [vmem:[%s322] sm:$0xf] %v419
        %422 = vst [vmem:[%s322 + $0x4] sm:$0xf] %v420
        %s423 = sand.u32 %s161, 1
        %s424 = scalar_lea.sflag [#allocation4], %s423
        %s425 = sand.u32 %s161, 1
        %s426 = smul.addr %s425, 8
        %s427 = scalar_lea.vmem [#allocation8], %s426
        // Predicated region
        $region49: #{tpu_custom_call.1} parent=35 // pred_check
          %p428 = pneg %p171
        $region50: #{tpu_custom_call.1} parent=35 // pred_check_branch
          %430 = sbr.rel (%p428) target = $region52
        $region51: #{tpu_custom_call.1} parent=35 // pred_region
          %s431 = smul.u32 2, %s27
          %433 = vsyncadd %s424, 0
          %s434 = sadd.s32 %s28, %s431
          %s435 = smul.addr %s434, 4
          %s436 = scalar_lea.hbm %s4, %s435
          %s437 = sshll.u32 %s427, 4
          %s438 = int_to_ptr.vmem [resolvable:$true] %s437
          %s439 = sshll.u32 %s436, 4
          %s440 = int_to_ptr.hbm [resolvable:$true] %s439
          %445 = dma.vmem_to_hbm [thread:$0]  %s438, 128, %s440, %s424, 64, 64, 4
        $region52: #{tpu_custom_call.1} parent=35 // pred_fallthru
          _
      $region36: #{tpu_custom_call.1} parent=5 // pred_fallthru
        _
      %p446 = scmp.le.s32.totalorder 2, %s17
      // Predicated region
      $region53: #{tpu_custom_call.1} parent=5 // pred_check
        %p447 = pneg %p446
      $region54: #{tpu_custom_call.1} parent=5 // pred_check_branch
        %449 = sbr.rel (%p447) target = $region56
      $region55: #{tpu_custom_call.1} parent=5 // pred_region
        %s450 = ssub.s32 %s17, 2
        // Predicated region
        $region57: #{tpu_custom_call.1} parent=55 // pred_check
          %p451 = pneg %p177
        $region58: #{tpu_custom_call.1} parent=55 // pred_check_branch
          %453 = sbr.rel (%p451) target = $region60
        $region59: #{tpu_custom_call.1} parent=55 // pred_region
          %s454 = sand.u32 %s162, 1
          %s455 = scalar_lea.sflag [#allocation4], %s454
          %s456 = sand.u32 %s162, 1
          %s457 = smul.addr %s456, 8
          %s458 = scalar_lea.vmem [#allocation8], %s457
          %460 = dma.done %s455, 128
        $region60: #{tpu_custom_call.1} parent=55 // pred_fallthru
          _
      $region56: #{tpu_custom_call.1} parent=5 // pred_fallthru
        _
    $region6: #{tpu_custom_call.1} parent=1 // loop_footer
      %s21 = sadd.s32 1, %s17
    $region7: #{tpu_custom_call.1} parent=1 // loop_footer_branch
      %16 = sbr.rel target = $region3
    $region8: #{tpu_custom_call.1} parent=1 // loop_exit
      _
    %461 = vsyncpa [#allocation3], 1
    %s462 = scalar_lea.sflag [#allocation3], 1
    %463 = vsyncpa %s462, 1
    %464 = vsyncpa [#allocation6], 1
    %465 = vsyncpa [#allocation4], 1
    %s466 = scalar_lea.sflag [#allocation4], 1
    %467 = vsyncpa %s466, 1

</llo_original>
